<compile_context>
chip_gen: v5e
topology: v5e:2x2
jax: 0.10.0
libtpu: 0.0.40
codegen_flags: <defaults>
</compile_context>

<pallas_src>
from functools import partial

import numpy as np
import jax
import jax.numpy as jnp
from jax.experimental import pallas as pl
from jax.experimental.pallas import tpu as pltpu


# ----------------------------- Pallas kernel ------------------------------ #

def _conv_matmul_kernel(x_ref, w_ref, b_ref, o_ref):
    # One row-tile of the strided convolution: (TM, s*E) @ (s*E, E_out) + bias.
    # bf16 operands, f32 MXU accumulation, f32 output.
    o_ref[...] = (jnp.dot(x_ref[...], w_ref[...],
                          preferred_element_type=jnp.float32)
                  + b_ref[...]).astype(o_ref.dtype)


def _round_up(x, m):
    return ((x + m - 1) // m) * m


def _pick_row_tile(M, K, E_out, *, granule=16, max_tile=512,
                   x_bytes=2, out_bytes=4, vmem_budget=20 << 20):
    """Choose the M row-tile for the (M, K) @ (K, E_out) Pallas matmul.

    - Large tiles (default up to 512) keep the MXU busy and amortize per-grid-step overhead.
    - Bounded so double-buffered x/out tiles + the resident weight tile stay well under the
      default 32 MiB scoped VMEM (safe even on v7x's 64 MiB physical VMEM).
    - granule=16 keeps bf16 sublane packing / (8,128) block constraints satisfied.
    - If M is big enough, keep the grid length >= 2 so both v7x TensorCores get work.
    """
    tile = min(max_tile, _round_up(max(M, granule), granule))
    while tile > granule:
        need = (2 * tile * K * x_bytes            # double-buffered x tiles
                + 2 * tile * E_out * out_bytes    # double-buffered out tiles
                + K * E_out * x_bytes             # resident weight tile
                + 2 * E_out * out_bytes)          # bias
        if need <= vmem_budget:
            break
        tile = _round_up(tile // 2, granule)
    if M > 2 * granule and _round_up(M, tile) // tile < 2:
        tile = _round_up(pl.cdiv(M, 2), granule)
    return tile


def strided_conv1d_folded(x, w_folded, b):
    """Conv1d with kernel_size == stride == s (PyTorch NCW semantics) as a Pallas matmul.

    x:        (B, L, E_in) float32, L % s == 0
    w_folded: (s * E_in, E_out) bfloat16, pre-folded from the torch (E_out, E_in, s) layout
    b:        (1, E_out) float32
    returns:  (B, L // s, E_out) float32
    """
    B, L, E_in = x.shape
    K, E_out = w_folded.shape
    s = K // E_in
    assert K == s * E_in and L % s == 0
    T = L // s
    M = B * T

    x2 = x.reshape(M, K).astype(w_folded.dtype)   # bf16 operands: MXU-native, halves x DMA
    TM = _pick_row_tile(M, K, E_out)
    Mp = _round_up(M, TM)
    if Mp != M:
        x2 = jnp.pad(x2, ((0, Mp - M), (0, 0)))

    cost = pl.CostEstimate(
        flops=2 * Mp * K * E_out,
        transcendentals=0,
        bytes_accessed=Mp * K * 2 + K * E_out * 2 + Mp * E_out * 4,
    )

    # NOTE: E_out (=embed_dim) may be < 128 lanes, so stores are masked; a lane-dense
    # (Mp//4, 128) output repack was considered but skipped since the in-kernel XLU repack
    # would offset the win at these sizes.
    out = pl.pallas_call(
        _conv_matmul_kernel,
        out_shape=jax.ShapeDtypeStruct((Mp, E_out), jnp.float32),
        grid_spec=pltpu.PrefetchScalarGridSpec(
            num_scalar_prefetch=0,
            grid=(Mp // TM,),
            in_specs=[
                pl.BlockSpec((TM, K), lambda i: (i, 0)),
                pl.BlockSpec((K, E_out), lambda i: (0, 0)),   # weight stays VMEM-resident
                pl.BlockSpec((1, E_out), lambda i: (0, 0)),
            ],
            out_specs=pl.BlockSpec((TM, E_out), lambda i: (i, 0)),
        ),
        compiler_params=pltpu.CompilerParams(
            dimension_semantics=("parallel",)),
        cost_estimate=cost,
    )(x2, w_folded, b)
    # Padded rows (bias-valued) are sliced off here before the reshape.
    return out[:M].reshape(B, T, E_out)


# -------------------- on-device ragged split / substitution ---------------- #

def _gather_layer(emb, value, offset, lens, Lmax):
    """Gather the padded per-batch layer slab: rows [offset_i, offset_i+lens_i) of batch i."""
    B, S, E = emb.shape
    col = jnp.arange(Lmax, dtype=jnp.int32)
    idx = offset[:, None] + col[None, :]                    # (B, Lmax)
    valid = col[None, :] < lens[:, None]
    idx_c = jnp.clip(idx, 0, S - 1)
    x = jnp.take_along_axis(emb, idx_c[:, :, None], axis=1)
    x = jnp.where(valid[:, :, None], x, 0.0)
    v = jnp.take_along_axis(value, idx_c, axis=1)
    v = jnp.where(valid, v, 0)
    return x, v


def _masked_substitute(x, lhs_mask, y, rhs_mask):
    """Static-shaped, on-device equivalent of torch `x[lhs_mask] = y[rhs_mask]`
    (row-major order on both sides). Returns (new_x, counts_match_flag)."""
    B, L, E = x.shape
    xf = x.reshape(B * L, E)
    ml = lhs_mask.reshape(B * L)
    yf = y.reshape(-1, E)
    mr = rhs_mask.reshape(-1)

    # Indices of selected rhs rows, in original order, placed first (stable sort on 0/1 keys).
    keys = jnp.where(mr, 0, 1).astype(jnp.int32)
    src_order = jnp.argsort(keys, stable=True)
    # Rank of each lhs position among the selected lhs positions (exclusive prefix sum).
    ml_i = ml.astype(jnp.int32)
    rank = jnp.cumsum(ml_i) - ml_i
    src_idx = src_order[jnp.clip(rank, 0, yf.shape[0] - 1)]
    sub = jnp.take(yf, src_idx, axis=0)
    out = jnp.where(ml[:, None], sub, xf)
    counts_ok = jnp.sum(ml_i) == jnp.sum(mr.astype(jnp.int32))
    return out.reshape(B, L, E), counts_ok


@partial(jax.jit, static_argnames=("L0", "L1", "L2", "conv_size"))
def _reduce_on_device(emb, value, len_2, len_1, len_0,
                      w0, b0, w1, b1, w2, b2,
                      *, L0, L1, L2, conv_size):
    zero = jnp.zeros_like(len_2)
    x_2, val_2 = _gather_layer(emb, value, zero, len_2, L2)
    x_1, val_1 = _gather_layer(emb, value, len_2, len_1, L1)
    x_0, val_0 = _gather_layer(emb, value, len_2 + len_1, len_0, L0)

    # padding mask: True where the (strided) second-from-last-layer value is padding '0'
    mask = val_2[:, ::conv_size] == 0

    y_0 = strided_conv1d_folded(x_0, w0, b0)
    x_1, ok_1 = _masked_substitute(x_1, val_1 == 2, y_0, val_0[:, ::8] != 0)
    y_1 = strided_conv1d_folded(x_1, w1, b1)
    x_2, ok_2 = _masked_substitute(x_2, val_2 == 2, y_1, val_1[:, ::8] != 0)
    out = strided_conv1d_folded(x_2, w2, b2)
    return out, mask, jnp.logical_and(ok_1, ok_2)


# --------------------------- Encoding (glue) ------------------------------- #

class BasicEncoding:
    """Deterministic stand-in for the abstract `encoding` module: value / depth /
    per-axis position lookup tables summed. Token value 0 is the padding row (zeros)."""

    def __init__(self, key, num_vocab, embed_dim, resolution, spatial_dim, max_depth=8):
        keys = jax.random.split(key, 2 + spatial_dim)
        scale = 0.02
        val_tab = scale * jax.random.normal(keys[0], (num_vocab + 1, embed_dim), jnp.float32)
        self.value_table = val_tab.at[0].set(0.0)
        self.depth_table = scale * jax.random.normal(keys[1], (max_depth + 1, embed_dim), jnp.float32)
        self.pos_tables = [
            scale * jax.random.normal(keys[2 + d], (resolution, embed_dim), jnp.float32)
            for d in range(spatial_dim)
        ]

    def __call__(self, value, depth, position):
        e = jnp.take(self.value_table, value, axis=0)
        e = e + jnp.take(self.depth_table, depth, axis=0)
        for d, tab in enumerate(self.pos_tables):
            e = e + jnp.take(tab, position[..., d], axis=0)
        return e


# ----------------------- DoubleSubstitutionEmbedding ----------------------- #

class DoubleSubstitutionEmbedding:
    def __init__(self, encoding, num_vocab, embed_dim, resolution, spatial_dim, conv_size, key):
        self.conv_size = conv_size
        self.spatial_dim = spatial_dim
        self.mask = None
        self.embedding = encoding
        k0, k1, k2 = jax.random.split(key, 3)
        # Weights folded into the (s*E_in, E_out) matmul layout and cast to bf16 once here
        # (hoisted out of the per-forward path).
        self.conv0 = self._init_conv(k0, embed_dim, embed_dim, 8)
        self.conv1 = self._init_conv(k1, embed_dim, embed_dim, 8)
        self.conv2 = self._init_conv(k2, embed_dim, embed_dim, conv_size)
        self.substitution_counts_ok = None   # device scalar; check lazily if desired

    @staticmethod
    def _init_conv(key, in_dim, out_dim, s):
        kw, kb = jax.random.split(key)
        bound = 1.0 / np.sqrt(in_dim * s)
        w = jax.random.uniform(kw, (out_dim, in_dim, s), jnp.float32, -bound, bound)
        b = jax.random.uniform(kb, (out_dim,), jnp.float32, -bound, bound)
        # W'[(k*E_in + i), o] = w[o, i, k]
        w_folded = jnp.transpose(w, (2, 1, 0)).reshape(s * in_dim, out_dim).astype(jnp.bfloat16)
        return w_folded, b.reshape(1, out_dim)

    def reduce(self, embedding, value, depth, position):
        # Only the tiny per-batch layer lengths are synced to host (to fix the static padded
        # shapes); the embedding tensor and the conv0 -> substitute -> conv1 -> substitute ->
        # conv2 chain stay entirely on device inside one jit.
        max_depth = int(jnp.max(depth))
        len_0 = jnp.sum(depth == max_depth, axis=1)
        len_1 = jnp.sum(depth == max_depth - 1, axis=1)
        len_2 = jnp.sum(depth == max_depth - 2, axis=1)
        l0, l1, l2 = np.asarray(len_0), np.asarray(len_1), np.asarray(len_2)
        assert np.all(l0 + l1 + l2 == value.shape[1])
        # Per-layer padded lengths, rounded up to the conv strides (octree layers come in
        # groups of 8 / conv_size; padded tail groups carry value '0' and are never selected).
        L0 = _round_up(max(int(l0.max()), 8), 8)
        L1 = _round_up(max(int(l1.max()), 8), 8)
        L2 = _round_up(max(int(l2.max()), self.conv_size), self.conv_size)

        w0, b0 = self.conv0
        w1, b1 = self.conv1
        w2, b2 = self.conv2
        out, mask, ok = _reduce_on_device(
            embedding, value, len_2, len_1, len_0,
            w0, b0, w1, b1, w2, b2,
            L0=L0, L1=L1, L2=L2, conv_size=self.conv_size)
        self.mask = mask
        self.substitution_counts_ok = ok   # no host sync on the hot path
        return out

    def forward(self, value, depth, position):
        return self.reduce(self.embedding(value, depth, position), value, depth, position)

    def padding_mask(self):
        return self.mask


# --------------------------------- demo ------------------------------------ #

if __name__ == "__main__":
    B = 2
    E = 32
    num_vocab = 3
    resolution = 16
    spatial_dim = 3
    conv_size = 4

    key = jax.random.PRNGKey(0)
    k_enc, k_mod, k_pos = jax.random.split(key, 3)

    # Consistent octree-style three-layer sequence:
    #   layer 2 (depth 3): 8 tokens, exactly two '2' (mixed) tokens
    #   layer 1 (depth 4): 16 tokens, exactly two '2' tokens (at stride-8 group starts)
    #   layer 0 (depth 5): 16 tokens, all non-zero
    len_2, len_1, len_0 = 8, 16, 16
    S = len_2 + len_1 + len_0

    val_rows = []
    for b in range(B):
        if b == 0:
            v2 = np.array([1, 2, 3, 1, 2, 3, 1, 3])
            v1 = np.full(16, 1); v1[[3, 11]] = 2
        else:
            v2 = np.array([2, 1, 1, 3, 3, 2, 1, 1])
            v1 = np.full(16, 3); v1[[0, 8]] = 2
        v0 = np.tile(np.array([1, 3, 1, 3, 1, 3, 1, 3]), 2)
        val_rows.append(np.concatenate([v2, v1, v0]))
    value = jnp.asarray(np.stack(val_rows), dtype=jnp.int32)

    depth_row = np.concatenate([np.full(len_2, 3), np.full(len_1, 4), np.full(len_0, 5)])
    depth = jnp.asarray(np.stack([depth_row] * B), dtype=jnp.int32)
    position = jax.random.randint(k_pos, (B, S, spatial_dim), 0, resolution, dtype=jnp.int32)

    encoding = BasicEncoding(k_enc, num_vocab, E, resolution, spatial_dim, max_depth=8)
    module = DoubleSubstitutionEmbedding(encoding, num_vocab, E, resolution,
                                         spatial_dim, conv_size, k_mod)

    out = module.forward(value, depth, position)
    out = jax.block_until_ready(out)
    assert out.shape == (B, len_2 // conv_size, E)
    assert out.dtype == jnp.float32
    assert module.padding_mask().shape == (B, len_2 // conv_size)
    assert bool(module.substitution_counts_ok)
    print("KERNEL_OK")
</pallas_src>

<mosaic_0001>
module attributes {stable_mosaic.version = 11 : i64} {
  func.func @_conv_matmul_kernel(%arg0: i32, %arg1: memref<16x256xbf16, #tpu.memory_space<vmem>>, %arg2: memref<256x32xbf16, #tpu.memory_space<vmem>>, %arg3: memref<1x32xf32, #tpu.memory_space<vmem>>, %arg4: memref<16x32xf32, #tpu.memory_space<vmem>>) attributes {dimension_semantics = [#tpu.dimension_semantics<parallel>], iteration_bounds = array<i64: 1>, scalar_prefetch = 0 : i64, scratch_operands = 0 : i64, tpu.core_type = #tpu.core_type<tc>, window_params = [{transform_indices = @transform_0, window_bounds = array<i64: 16, 256>}, {pipeline_mode = #tpu.pipeline_mode<synchronous>, transform_indices = @transform_1, window_bounds = array<i64: 256, 32>}, {pipeline_mode = #tpu.pipeline_mode<synchronous>, transform_indices = @transform_2, window_bounds = array<i64: 1, 32>}, {transform_indices = @transform_3, window_bounds = array<i64: 16, 32>}]} {
    %c0 = arith.constant 0 : index
    %c0_0 = arith.constant 0 : index
    %0 = vector.load %arg1[%c0, %c0_0] : memref<16x256xbf16, #tpu.memory_space<vmem>>, vector<16x256xbf16>
    %c0_1 = arith.constant 0 : index
    %c0_2 = arith.constant 0 : index
    %1 = vector.load %arg2[%c0_1, %c0_2] : memref<256x32xbf16, #tpu.memory_space<vmem>>, vector<256x32xbf16>
    %cst = arith.constant dense<0.000000e+00> : vector<16x32xf32>
    %2 = tpu.matmul %0, %1, %cst {dimension_numbers = #tpu.dot_dimension_numbers<[1], [0], [0], [1], [0, 0, 1, 1], [], []>} : vector<16x256xbf16>, vector<256x32xbf16>, vector<16x32xf32> -> vector<16x32xf32>
    %c0_3 = arith.constant 0 : index
    %c0_4 = arith.constant 0 : index
    %3 = vector.load %arg3[%c0_3, %c0_4] : memref<1x32xf32, #tpu.memory_space<vmem>>, vector<1x32xf32>
    %4 = vector.broadcast %3 : vector<1x32xf32> to vector<16x32xf32>
    %5 = arith.addf %2, %4 : vector<16x32xf32>
    %c0_5 = arith.constant 0 : index
    %c0_6 = arith.constant 0 : index
    %6 = vector.load %arg4[%c0_5, %c0_6] : memref<16x32xf32, #tpu.memory_space<vmem>>, vector<16x32xf32>
    tpu.vector_store %arg4[%c0_5, %c0_6], %5 {strides = array<i32>} : memref<16x32xf32, #tpu.memory_space<vmem>>, vector<16x32xf32>,
    return
  }
  func.func @transform_0(%arg0: i32) -> (i32, i32) {
    %c0_i32 = arith.constant 0 : i32
    %c0_i32_0 = arith.constant 0 : i32
    return %arg0, %c0_i32 : i32, i32
  }
  func.func @transform_1(%arg0: i32) -> (i32, i32) {
    %c0_i32 = arith.constant 0 : i32
    %c0_i32_0 = arith.constant 0 : i32
    %c0_i32_1 = arith.constant 0 : i32
    return %c0_i32, %c0_i32_0 : i32, i32
  }
  func.func @transform_2(%arg0: i32) -> (i32, i32) {
    %c0_i32 = arith.constant 0 : i32
    %c0_i32_0 = arith.constant 0 : i32
    %c0_i32_1 = arith.constant 0 : i32
    return %c0_i32, %c0_i32_0 : i32, i32
  }
  func.func @transform_3(%arg0: i32) -> (i32, i32) {
    %c0_i32 = arith.constant 0 : i32
    %c0_i32_0 = arith.constant 0 : i32
    return %arg0, %c0_i32 : i32, i32
  }
}

module attributes {stable_mosaic.version = 11 : i64} {
  func.func @_conv_matmul_kernel(%arg0: i32, %arg1: memref<16x128xbf16, #tpu.memory_space<vmem>>, %arg2: memref<128x32xbf16, #tpu.memory_space<vmem>>, %arg3: memref<1x32xf32, #tpu.memory_space<vmem>>, %arg4: memref<16x32xf32, #tpu.memory_space<vmem>>) attributes {dimension_semantics = [#tpu.dimension_semantics<parallel>], iteration_bounds = array<i64: 1>, scalar_prefetch = 0 : i64, scratch_operands = 0 : i64, tpu.core_type = #tpu.core_type<tc>, window_params = [{transform_indices = @transform_0, window_bounds = array<i64: 16, 128>}, {pipeline_mode = #tpu.pipeline_mode<synchronous>, transform_indices = @transform_1, window_bounds = array<i64: 128, 32>}, {pipeline_mode = #tpu.pipeline_mode<synchronous>, transform_indices = @transform_2, window_bounds = array<i64: 1, 32>}, {transform_indices = @transform_3, window_bounds = array<i64: 16, 32>}]} {
    %c0 = arith.constant 0 : index
    %c0_0 = arith.constant 0 : index
    %0 = vector.load %arg1[%c0, %c0_0] : memref<16x128xbf16, #tpu.memory_space<vmem>>, vector<16x128xbf16>
    %c0_1 = arith.constant 0 : index
    %c0_2 = arith.constant 0 : index
    %1 = vector.load %arg2[%c0_1, %c0_2] : memref<128x32xbf16, #tpu.memory_space<vmem>>, vector<128x32xbf16>
    %cst = arith.constant dense<0.000000e+00> : vector<16x32xf32>
    %2 = tpu.matmul %0, %1, %cst {dimension_numbers = #tpu.dot_dimension_numbers<[1], [0], [0], [1], [0, 0, 1, 1], [], []>} : vector<16x128xbf16>, vector<128x32xbf16>, vector<16x32xf32> -> vector<16x32xf32>
    %c0_3 = arith.constant 0 : index
    %c0_4 = arith.constant 0 : index
    %3 = vector.load %arg3[%c0_3, %c0_4] : memref<1x32xf32, #tpu.memory_space<vmem>>, vector<1x32xf32>
    %4 = vector.broadcast %3 : vector<1x32xf32> to vector<16x32xf32>
    %5 = arith.addf %2, %4 : vector<16x32xf32>
    %c0_5 = arith.constant 0 : index
    %c0_6 = arith.constant 0 : index
    %6 = vector.load %arg4[%c0_5, %c0_6] : memref<16x32xf32, #tpu.memory_space<vmem>>, vector<16x32xf32>
    tpu.vector_store %arg4[%c0_5, %c0_6], %5 {strides = array<i32>} : memref<16x32xf32, #tpu.memory_space<vmem>>, vector<16x32xf32>,
    return
  }
  func.func @transform_0(%arg0: i32) -> (i32, i32) {
    %c0_i32 = arith.constant 0 : i32
    %c0_i32_0 = arith.constant 0 : i32
    return %arg0, %c0_i32 : i32, i32
  }
  func.func @transform_1(%arg0: i32) -> (i32, i32) {
    %c0_i32 = arith.constant 0 : i32
    %c0_i32_0 = arith.constant 0 : i32
    %c0_i32_1 = arith.constant 0 : i32
    return %c0_i32, %c0_i32_0 : i32, i32
  }
  func.func @transform_2(%arg0: i32) -> (i32, i32) {
    %c0_i32 = arith.constant 0 : i32
    %c0_i32_0 = arith.constant 0 : i32
    %c0_i32_1 = arith.constant 0 : i32
    return %c0_i32, %c0_i32_0 : i32, i32
  }
  func.func @transform_3(%arg0: i32) -> (i32, i32) {
    %c0_i32 = arith.constant 0 : i32
    %c0_i32_0 = arith.constant 0 : i32
    return %arg0, %c0_i32 : i32, i32
  }
}

</mosaic_0001>

<llo_original>
// kernel: _reduce_on_device.5
$region0: #{_reduce_on_device.5}
  #allocation0 [shape = 'u32[]', space=smem, size = 0x4, offset = 0x4, fixed_abs, tag = 'smem constant byte address 0x4 - core index']
  #allocation1 [shape = 'u32[72,128]{1,0:T(1,128)}', space=vmem, size = 0x9000, scoped, tag = 'internal scratch']
  %s0 = inlined_call_operand.vmem [shape: bf16[16,128], index: 0, kind: input, shape index: {}]
  %s1 = inlined_call_operand.vmem [shape: bf16[128,32], index: 1, kind: input, shape index: {}]
  %s2 = inlined_call_operand.vmem [shape: f32[1,32], index: 2, kind: input, shape index: {}]
  %s3 = inlined_call_operand.vmem [shape: f32[16,32], index: 3, kind: output, shape index: {}]
  %s4 = sld [smem:[#allocation0]]
  $region22: #{_reduce_on_device.5} parent=0
    _
  %s6 = ssub.s32 1, %s4
  %s7 = scalar_select 0, %s6, %s4
  // Predicated region
  $region2: #{_reduce_on_device.5} parent=0 // pred_check
    _
  $region3: #{_reduce_on_device.5} parent=0 // pred_check_branch
    %9 = sbr.rel (0) target = $region5
  $region4: #{_reduce_on_device.5} parent=0 // pred_region
    _
  $region5: #{_reduce_on_device.5} parent=0 // pred_fallthru
    _
  // Predicated region
  $region6: #{_reduce_on_device.5} parent=0 // pred_check
    _
  $region7: #{_reduce_on_device.5} parent=0 // pred_check_branch
    %11 = sbr.rel (0) target = $region9
  $region8: #{_reduce_on_device.5} parent=0 // pred_region
    _
  $region9: #{_reduce_on_device.5} parent=0 // pred_fallthru
    _
  // Predicated region
  $region10: #{_reduce_on_device.5} parent=0 // pred_check
    _
  $region11: #{_reduce_on_device.5} parent=0 // pred_check_branch
    %13 = sbr.rel (0) target = $region13
  $region12: #{_reduce_on_device.5} parent=0 // pred_region
    _
  $region13: #{_reduce_on_device.5} parent=0 // pred_fallthru
    _
  %v14 = vld [vmem:[%s0] sm:$0xf]
  %v15 = vld [vmem:[%s0 + $0x4] sm:$0xf]
  %v16 = vld [vmem:[%s1] sm:$0xf]
  %v17 = vld [vmem:[%s1 + $0x4] sm:$0xf]
  %v18 = vld [vmem:[%s1 + $0x8] sm:$0xf]
  %v19 = vld [vmem:[%s1 + $0xc] sm:$0xf]
  %v20 = vld [vmem:[%s1 + $0x10] sm:$0xf]
  %v21 = vld [vmem:[%s1 + $0x14] sm:$0xf]
  %v22 = vld [vmem:[%s1 + $0x18] sm:$0xf]
  %v23 = vld [vmem:[%s1 + $0x1c] sm:$0xf]
  %v24 = vld [vmem:[%s1 + $0x20] sm:$0xf]
  %v25 = vld [vmem:[%s1 + $0x24] sm:$0xf]
  %v26 = vld [vmem:[%s1 + $0x28] sm:$0xf]
  %v27 = vld [vmem:[%s1 + $0x2c] sm:$0xf]
  %v28 = vld [vmem:[%s1 + $0x30] sm:$0xf]
  %v29 = vld [vmem:[%s1 + $0x34] sm:$0xf]
  %v30 = vld [vmem:[%s1 + $0x38] sm:$0xf]
  %v31 = vld [vmem:[%s1 + $0x3c] sm:$0xf]
  %v32 = vld [vmem:[%s2] sm:$0x1]
  %v34 = vperm.slane %v32, 0
  %v38 = vunpack.c.l.b16 %v14
  %v39 = vunpack.c.l.b16 %v15
  %v40 = vpack.c.b16 %v39, %v38
  %v58 = vunpack.c.l.b16 %v16
  %v59 = vunpack.c.l.b16 %v17
  %v60 = vunpack.c.l.b16 %v18
  %v61 = vunpack.c.l.b16 %v19
  %v62 = vunpack.c.l.b16 %v20
  %v63 = vunpack.c.l.b16 %v21
  %v64 = vunpack.c.l.b16 %v22
  %v65 = vunpack.c.l.b16 %v23
  %v66 = vunpack.c.l.b16 %v24
  %v67 = vunpack.c.l.b16 %v25
  %v68 = vunpack.c.l.b16 %v26
  %v69 = vunpack.c.l.b16 %v27
  %v70 = vunpack.c.l.b16 %v28
  %v71 = vunpack.c.l.b16 %v29
  %v72 = vunpack.c.l.b16 %v30
  %v73 = vunpack.c.l.b16 %v31
  %v74 = vpack.c.b16 %v59, %v58
  %v75 = vpack.c.b16 %v61, %v60
  %v76 = vpack.c.b16 %v63, %v62
  %v77 = vpack.c.b16 %v65, %v64
  %v78 = vpack.c.b16 %v67, %v66
  %v79 = vpack.c.b16 %v69, %v68
  %v80 = vpack.c.b16 %v71, %v70
  %v81 = vpack.c.b16 %v73, %v72
  %90 = vmatpush.bf16.msra.mxu0 %v81
  %91 = vmatpush.bf16.msra.mxu0 %v80
  %92 = vmatpush.bf16.msra.mxu0 %v79
  %93 = vmatpush.bf16.msra.mxu0 %v78
  %94 = vmatpush.bf16.msra.mxu0 %v77
  %95 = vmatpush.bf16.msra.mxu0 %v76
  %96 = vmatpush.bf16.msra.mxu0 %v75
  %97 = vmatpush.bf16.msra.mxu0 %v74
  %98 = vmatmul.bf16.gmra.mxu0 %v40
  %v99 = vpop.f32.mrf.mxu0
  %v100 = vadd.f32 %v34, %v99
  %v101 = vpop.f32.mrf.mxu0
  %v102 = vadd.f32 %v34, %v101
  %103 = vdwg.mxu0
  %vm104 = vcmask 261120
  %105 = vst.msk [vmem:[%s3] sm:$0xff] %vm104, %v100
  %106 = vst.msk [vmem:[%s3 + $0x8] sm:$0xff] %vm104, %v102
  // Predicated region
  $region14: #{_reduce_on_device.5} parent=0 // pred_check
    _
  $region15: #{_reduce_on_device.5} parent=0 // pred_check_branch
    %108 = sbr.rel (0) target = $region17
  $region16: #{_reduce_on_device.5} parent=0 // pred_region
    _
  $region17: #{_reduce_on_device.5} parent=0 // pred_fallthru
    _
  // Predicated region
  $region18: #{_reduce_on_device.5} parent=0 // pred_check
    _
  $region19: #{_reduce_on_device.5} parent=0 // pred_check_branch
    %110 = sbr.rel (0) target = $region21
  $region20: #{_reduce_on_device.5} parent=0 // pred_region
    _
  $region21: #{_reduce_on_device.5} parent=0 // pred_fallthru
    _

// kernel: _reduce_on_device.3
$region0: #{_reduce_on_device.3}
  #allocation0 [shape = 'u32[]', space=smem, size = 0x4, offset = 0x4, fixed_abs, tag = 'smem constant byte address 0x4 - core index']
  #allocation1 [shape = 'u32[72,128]{1,0:T(1,128)}', space=vmem, size = 0x9000, scoped, tag = 'internal scratch']
  %s0 = inlined_call_operand.vmem [shape: bf16[16,256], index: 0, kind: input, shape index: {}]
  %s1 = inlined_call_operand.vmem [shape: bf16[256,32], index: 1, kind: input, shape index: {}]
  %s2 = inlined_call_operand.vmem [shape: f32[1,32], index: 2, kind: input, shape index: {}]
  %s3 = inlined_call_operand.vmem [shape: f32[16,32], index: 3, kind: output, shape index: {}]
  %s4 = sld [smem:[#allocation0]]
  $region22: #{_reduce_on_device.3} parent=0
    _
  %s6 = ssub.s32 1, %s4
  %s7 = scalar_select 0, %s6, %s4
  // Predicated region
  $region2: #{_reduce_on_device.3} parent=0 // pred_check
    _
  $region3: #{_reduce_on_device.3} parent=0 // pred_check_branch
    %9 = sbr.rel (0) target = $region5
  $region4: #{_reduce_on_device.3} parent=0 // pred_region
    _
  $region5: #{_reduce_on_device.3} parent=0 // pred_fallthru
    _
  // Predicated region
  $region6: #{_reduce_on_device.3} parent=0 // pred_check
    _
  $region7: #{_reduce_on_device.3} parent=0 // pred_check_branch
    %11 = sbr.rel (0) target = $region9
  $region8: #{_reduce_on_device.3} parent=0 // pred_region
    _
  $region9: #{_reduce_on_device.3} parent=0 // pred_fallthru
    _
  // Predicated region
  $region10: #{_reduce_on_device.3} parent=0 // pred_check
    _
  $region11: #{_reduce_on_device.3} parent=0 // pred_check_branch
    %13 = sbr.rel (0) target = $region13
  $region12: #{_reduce_on_device.3} parent=0 // pred_region
    _
  $region13: #{_reduce_on_device.3} parent=0 // pred_fallthru
    _
  %v14 = vld [vmem:[%s0] sm:$0xff]
  %v15 = vld [vmem:[%s0 + $0x8] sm:$0xff]
  %v16 = vld [vmem:[%s1] sm:$0xf]
  %v17 = vld [vmem:[%s1 + $0x4] sm:$0xf]
  %v18 = vld [vmem:[%s1 + $0x8] sm:$0xf]
  %v19 = vld [vmem:[%s1 + $0xc] sm:$0xf]
  %v20 = vld [vmem:[%s1 + $0x10] sm:$0xf]
  %v21 = vld [vmem:[%s1 + $0x14] sm:$0xf]
  %v22 = vld [vmem:[%s1 + $0x18] sm:$0xf]
  %v23 = vld [vmem:[%s1 + $0x1c] sm:$0xf]
  %v24 = vld [vmem:[%s1 + $0x20] sm:$0xf]
  %v25 = vld [vmem:[%s1 + $0x24] sm:$0xf]
  %v26 = vld [vmem:[%s1 + $0x28] sm:$0xf]
  %v27 = vld [vmem:[%s1 + $0x2c] sm:$0xf]
  %v28 = vld [vmem:[%s1 + $0x30] sm:$0xf]
  %v29 = vld [vmem:[%s1 + $0x34] sm:$0xf]
  %v30 = vld [vmem:[%s1 + $0x38] sm:$0xf]
  %v31 = vld [vmem:[%s1 + $0x3c] sm:$0xf]
  %v32 = vld [vmem:[%s1 + $0x40] sm:$0xf]
  %v33 = vld [vmem:[%s1 + $0x44] sm:$0xf]
  %v34 = vld [vmem:[%s1 + $0x48] sm:$0xf]
  %v35 = vld [vmem:[%s1 + $0x4c] sm:$0xf]
  %v36 = vld [vmem:[%s1 + $0x50] sm:$0xf]
  %v37 = vld [vmem:[%s1 + $0x54] sm:$0xf]
  %v38 = vld [vmem:[%s1 + $0x58] sm:$0xf]
  %v39 = vld [vmem:[%s1 + $0x5c] sm:$0xf]
  %v40 = vld [vmem:[%s1 + $0x60] sm:$0xf]
  %v41 = vld [vmem:[%s1 + $0x64] sm:$0xf]
  %v42 = vld [vmem:[%s1 + $0x68] sm:$0xf]
  %v43 = vld [vmem:[%s1 + $0x6c] sm:$0xf]
  %v44 = vld [vmem:[%s1 + $0x70] sm:$0xf]
  %v45 = vld [vmem:[%s1 + $0x74] sm:$0xf]
  %v46 = vld [vmem:[%s1 + $0x78] sm:$0xf]
  %v47 = vld [vmem:[%s1 + $0x7c] sm:$0xf]
  %v48 = vld [vmem:[%s2] sm:$0x1]
  %v50 = vperm.slane %v48, 0
  %v54 = vunpack.c.l.b16 %v14
  %v55 = vunpack.c.h.b16 %v14
  %v56 = vunpack.c.l.b16 %v15
  %v57 = vunpack.c.h.b16 %v15
  %v58 = vpack.c.b16 %v56, %v54
  %v59 = vpack.c.b16 %v57, %v55
  %v94 = vunpack.c.l.b16 %v16
  %v95 = vunpack.c.l.b16 %v17
  %v96 = vunpack.c.l.b16 %v18
  %v97 = vunpack.c.l.b16 %v19
  %v98 = vunpack.c.l.b16 %v20
  %v99 = vunpack.c.l.b16 %v21
  %v100 = vunpack.c.l.b16 %v22
  %v101 = vunpack.c.l.b16 %v23
  %v102 = vunpack.c.l.b16 %v24
  %v103 = vunpack.c.l.b16 %v25
  %v104 = vunpack.c.l.b16 %v26
  %v105 = vunpack.c.l.b16 %v27
  %v106 = vunpack.c.l.b16 %v28
  %v107 = vunpack.c.l.b16 %v29
  %v108 = vunpack.c.l.b16 %v30
  %v109 = vunpack.c.l.b16 %v31
  %v110 = vunpack.c.l.b16 %v32
  %v111 = vunpack.c.l.b16 %v33
  %v112 = vunpack.c.l.b16 %v34
  %v113 = vunpack.c.l.b16 %v35
  %v114 = vunpack.c.l.b16 %v36
  %v115 = vunpack.c.l.b16 %v37
  %v116 = vunpack.c.l.b16 %v38
  %v117 = vunpack.c.l.b16 %v39
  %v118 = vunpack.c.l.b16 %v40
  %v119 = vunpack.c.l.b16 %v41
  %v120 = vunpack.c.l.b16 %v42
  %v121 = vunpack.c.l.b16 %v43
  %v122 = vunpack.c.l.b16 %v44
  %v123 = vunpack.c.l.b16 %v45
  %v124 = vunpack.c.l.b16 %v46
  %v125 = vunpack.c.l.b16 %v47
  %v126 = vpack.c.b16 %v95, %v94
  %v127 = vpack.c.b16 %v97, %v96
  %v128 = vpack.c.b16 %v99, %v98
  %v129 = vpack.c.b16 %v101, %v100
  %v130 = vpack.c.b16 %v103, %v102
  %v131 = vpack.c.b16 %v105, %v104
  %v132 = vpack.c.b16 %v107, %v106
  %v133 = vpack.c.b16 %v109, %v108
  %v134 = vpack.c.b16 %v111, %v110
  %v135 = vpack.c.b16 %v113, %v112
  %v136 = vpack.c.b16 %v115, %v114
  %v137 = vpack.c.b16 %v117, %v116
  %v138 = vpack.c.b16 %v119, %v118
  %v139 = vpack.c.b16 %v121, %v120
  %v140 = vpack.c.b16 %v123, %v122
  %v141 = vpack.c.b16 %v125, %v124
  %158 = vmatpush.bf16.msra.mxu0 %v133
  %159 = vmatpush.bf16.msra.mxu0 %v132
  %160 = vmatpush.bf16.msra.mxu0 %v131
  %161 = vmatpush.bf16.msra.mxu0 %v130
  %162 = vmatpush.bf16.msra.mxu0 %v129
  %163 = vmatpush.bf16.msra.mxu0 %v128
  %164 = vmatpush.bf16.msra.mxu0 %v127
  %165 = vmatpush.bf16.msra.mxu0 %v126
  %166 = vmatmul.bf16.gmra.mxu0 %v58
  %v167 = vpop.f32.mrf.mxu0
  %v168 = vadd.f32 %v50, %v167
  %v169 = vpop.f32.mrf.mxu0
  %v170 = vadd.f32 %v50, %v169
  %171 = vdwg.mxu0
  %172 = vmatpush.bf16.msra.mxu0 %v141
  %173 = vmatpush.bf16.msra.mxu0 %v140
  %174 = vmatpush.bf16.msra.mxu0 %v139
  %175 = vmatpush.bf16.msra.mxu0 %v138
  %176 = vmatpush.bf16.msra.mxu0 %v137
  %177 = vmatpush.bf16.msra.mxu0 %v136
  %178 = vmatpush.bf16.msra.mxu0 %v135
  %179 = vmatpush.bf16.msra.mxu0 %v134
  %180 = vmatmul.bf16.gmra.mxu0 %v59
  %v181 = vpop.f32.mrf.mxu0
  %v182 = vadd.f32 %v168, %v181
  %v183 = vpop.f32.mrf.mxu0
  %v184 = vadd.f32 %v170, %v183
  %185 = vdwg.mxu0
  %vm186 = vcmask 261120
  %187 = vst.msk [vmem:[%s3] sm:$0xff] %vm186, %v182
  %188 = vst.msk [vmem:[%s3 + $0x8] sm:$0xff] %vm186, %v184
  // Predicated region
  $region14: #{_reduce_on_device.3} parent=0 // pred_check
    _
  $region15: #{_reduce_on_device.3} parent=0 // pred_check_branch
    %190 = sbr.rel (0) target = $region17
  $region16: #{_reduce_on_device.3} parent=0 // pred_region
    _
  $region17: #{_reduce_on_device.3} parent=0 // pred_fallthru
    _
  // Predicated region
  $region18: #{_reduce_on_device.3} parent=0 // pred_check
    _
  $region19: #{_reduce_on_device.3} parent=0 // pred_check_branch
    %192 = sbr.rel (0) target = $region21
  $region20: #{_reduce_on_device.3} parent=0 // pred_region
    _
  $region21: #{_reduce_on_device.3} parent=0 // pred_fallthru
    _

</llo_original>
